<compile_context>
chip_gen: v7x
topology: tpu7x:2x2x1
jax: 0.10.0
libtpu: 0.0.40
codegen_flags: <defaults>
</compile_context>

<pallas_src>
import jax
import jax.numpy as jnp
from jax import lax
from jax.experimental import pallas as pl
from jax.experimental.pallas import tpu as pltpu

LANES = 128
SUBLANES = 8
CHUNK_ROWS = 256              # in-kernel chunk: 256x128 f32 = 128 KiB per temp
MAX_BLOCK_BYTES = 8 << 20     # cap per-input block at 8 MiB


def _cdiv(a, b):
    return -(-a // b)


def _round_up(x, m):
    return _cdiv(x, m) * m


def _tpu_vmem_capacity_bytes():
    """Physical VMEM per TensorCore; conservative fallback if query fails."""
    try:
        info = pltpu.get_tpu_info()
        cap = getattr(info, "vmem_capacity_bytes", None)
        if cap:
            return int(cap)
    except Exception:
        pass
    return 64 << 20  # v7x physical VMEM (smallest across generations)


def _num_tensorcores():
    """Best-effort TensorCore count per chip; 1 if undetectable (safe)."""
    try:
        info = pltpu.get_tpu_info()
        for attr in ("num_cores", "core_count", "num_tensorcores"):
            v = getattr(info, attr, None)
            if isinstance(v, int) and v > 0:
                return v
    except Exception:
        pass
    try:
        dev = jax.devices()[0]
        for attr in ("num_cores", "core_count"):
            v = getattr(dev, attr, None)
            if isinstance(v, int) and v > 0:
                return v
    except Exception:
        pass
    return 1


def _max_tile_rows(itemsize):
    """Largest row tile such that 2 inputs x 2 pipeline buffers fit ~half VMEM."""
    vmem_cap = _tpu_vmem_capacity_bytes()
    per_block_bytes = min(MAX_BLOCK_BYTES, (vmem_cap // 2) // 4)
    tile_rows = (per_block_bytes // (LANES * itemsize)) // CHUNK_ROWS * CHUNK_ROWS
    return max(CHUNK_ROWS, tile_rows), vmem_cap


def _make_mse_kernel(tile_rows, chunk_rows, valid_rows, n_red, need_mask):
    """sum((pred-target)^2) folded onto an (8,128) f32 output block."""
    n_chunks = tile_rows // chunk_rows

    def kernel(pred_ref, target_ref, out_ref):
        p = pl.program_id(0)
        k = pl.program_id(1)

        @pl.when(k == 0)
        def _():
            out_ref[...] = jnp.zeros_like(out_ref)

        if need_mask:
            block_row0 = (p * n_red + k) * tile_rows

        def chunk_body(c, acc):
            r0 = c * chunk_rows
            if not isinstance(r0, int):
                r0 = pl.multiple_of(r0, chunk_rows)
            pr = pred_ref[pl.ds(r0, chunk_rows), :].astype(jnp.float32)
            tr = target_ref[pl.ds(r0, chunk_rows), :].astype(jnp.float32)
            d = pr - tr
            if need_mask:
                # Zero out rows past the logical end (OOB block rows hold
                # unspecified data). Pure VPU work; huge slack vs. HBM.
                rows = (block_row0 + r0
                        + lax.broadcasted_iota(jnp.int32, (chunk_rows, LANES), 0))
                d = jnp.where(rows < valid_rows, d, 0.0)
            sq = d * d
            # Fold onto (8,128) with elementwise VPU adds only (no XLU work).
            return acc + jnp.sum(
                sq.reshape(chunk_rows // SUBLANES, SUBLANES, LANES), axis=0)

        acc0 = jnp.zeros((SUBLANES, LANES), jnp.float32)
        if n_chunks == 1:
            acc = chunk_body(0, acc0)
        else:
            acc = lax.fori_loop(0, n_chunks, chunk_body, acc0,
                                unroll=(n_chunks <= 8))
        out_ref[...] += acc

    return kernel


def mse_loss_pallas(pred, target):
    """Mean-squared error over all elements (torch.nn.MSELoss semantics)."""
    assert pred.shape == target.shape, "MSELoss requires matching shapes"
    out_dtype = pred.dtype
    n_elems = pred.size
    if n_elems == 0:
        # torch returns nan (with a warning) for empty inputs under 'mean'.
        return jnp.array(jnp.nan, dtype=out_dtype)

    pred_flat = pred.reshape(-1)
    target_flat = target.reshape(-1)

    # Pad ONLY when the element count is not lane-aligned (rare); padded diffs
    # are exactly zero. Row-raggedness is handled in-kernel (no pad needed).
    lane_padded = _round_up(n_elems, LANES)
    if lane_padded != n_elems:
        pad = lane_padded - n_elems
        pred_flat = jnp.pad(pred_flat, (0, pad))
        target_flat = jnp.pad(target_flat, (0, pad))

    valid_rows = lane_padded // LANES
    pred2 = pred_flat.reshape(valid_rows, LANES)
    target2 = target_flat.reshape(valid_rows, LANES)

    itemsize = max(jnp.dtype(pred.dtype).itemsize, jnp.dtype(target.dtype).itemsize)
    max_tile_rows, vmem_cap = _max_tile_rows(itemsize)

    chunk_rows = min(CHUNK_ROWS, _round_up(valid_rows, SUBLANES))

    # Shard rows across TensorCores only when more than one is present.
    num_tc = _num_tensorcores()
    n_par = 2 if (num_tc >= 2 and valid_rows >= 2 * chunk_rows) else 1

    per_core_rows = _cdiv(valid_rows, n_par)
    tile_rows = min(max_tile_rows, _round_up(per_core_rows, chunk_rows))
    n_red = _cdiv(per_core_rows, tile_rows)
    coverage_rows = n_par * n_red * tile_rows
    need_mask = coverage_rows > valid_rows

    block_bytes = tile_rows * LANES * itemsize
    vmem_limit = int(min(vmem_cap, 4 * block_bytes + (16 << 20)))

    kernel = _make_mse_kernel(tile_rows, chunk_rows, valid_rows, n_red, need_mask)

    in_index = lambda p, k: (p * n_red + k, 0)
    partials = pl.pallas_call(
        kernel,
        out_shape=jax.ShapeDtypeStruct((n_par * SUBLANES, LANES), jnp.float32),
        grid_spec=pltpu.PrefetchScalarGridSpec(
            num_scalar_prefetch=0,
            grid=(n_par, n_red),
            in_specs=[
                pl.BlockSpec((tile_rows, LANES), in_index),
                pl.BlockSpec((tile_rows, LANES), in_index),
            ],
            out_specs=pl.BlockSpec((SUBLANES, LANES), lambda p, k: (p, 0)),
        ),
        compiler_params=pltpu.CompilerParams(
            dimension_semantics=("parallel", "arbitrary"),
            vmem_limit_bytes=vmem_limit,
        ),
    )(pred2, target2)

    # Single cheap cross-lane reduce + 1/N scale, outside the hot loop.
    loss = jnp.sum(partials) / jnp.float32(n_elems)
    return loss.astype(out_dtype)


if __name__ == "__main__":
    key = jax.random.PRNGKey(0)
    k1, k2, k3, k4, k5, k6 = jax.random.split(key, 6)

    # forward(output, score): both are score predictions of the same shape.
    output = jax.random.normal(k1, (2, 4, 16, 16), dtype=jnp.float32)
    score = jax.random.normal(k2, (2, 4, 16, 16), dtype=jnp.float32)
    loss = jax.block_until_ready(mse_loss_pallas(output, score))
    ref = jnp.mean((output - score) ** 2)
    assert jnp.allclose(loss, ref, rtol=1e-5, atol=1e-6), (loss, ref)

    # Ragged shape: exercises the lane-pad fallback + in-kernel row mask.
    o2 = jax.random.normal(k3, (7, 19, 5), dtype=jnp.float32)
    s2 = jax.random.normal(k4, (7, 19, 5), dtype=jnp.float32)
    l2 = jax.block_until_ready(mse_loss_pallas(o2, s2))
    r2 = jnp.mean((o2 - s2) ** 2)
    assert jnp.allclose(l2, r2, rtol=1e-5, atol=1e-6), (l2, r2)

    # Larger shape: exercises the chunked fori_loop + masked tail rows.
    o3 = jax.random.normal(k5, (2, 4, 96, 96), dtype=jnp.float32)
    s3 = jax.random.normal(k6, (2, 4, 96, 96), dtype=jnp.float32)
    l3 = jax.block_until_ready(mse_loss_pallas(o3, s3))
    r3 = jnp.mean((o3 - s3) ** 2)
    assert jnp.allclose(l3, r3, rtol=1e-5, atol=1e-6), (l3, r3)

    print("KERNEL_OK")
</pallas_src>

<mosaic_0001>
module attributes {stable_mosaic.version = 11 : i64} {
  func.func @kernel(%arg0: i32, %arg1: i32, %arg2: memref<16x128xf32, #tpu.memory_space<vmem>>, %arg3: memref<16x128xf32, #tpu.memory_space<vmem>>, %arg4: memref<8x128xf32, #tpu.memory_space<vmem>>) attributes {dimension_semantics = [#tpu.dimension_semantics<parallel>, #tpu.dimension_semantics<arbitrary>], iteration_bounds = array<i64: 1, 1>, scalar_prefetch = 0 : i64, scratch_operands = 0 : i64, tpu.core_type = #tpu.core_type<tc>, window_params = [{transform_indices = @transform_0, window_bounds = array<i64: 16, 128>}, {transform_indices = @transform_1, window_bounds = array<i64: 16, 128>}, {transform_indices = @transform_2, window_bounds = array<i64: 8, 128>}]} {
    %c0_i32 = arith.constant 0 : i32
    %0 = arith.cmpi eq, %arg1, %c0_i32 : i32
    %1 = arith.extui %0 : i1 to i32
    %c0_i32_0 = arith.constant 0 : i32
    %2 = arith.cmpi ne, %1, %c0_i32_0 : i32
    scf.if %2 {
      %cst_9 = arith.constant 0.000000e+00 : f32
      %14 = vector.broadcast %cst_9 : f32 to vector<8x128xf32>
      %c0_10 = arith.constant 0 : index
      %c0_11 = arith.constant 0 : index
      %15 = vector.load %arg4[%c0_10, %c0_11] : memref<8x128xf32, #tpu.memory_space<vmem>>, vector<8x128xf32>
      tpu.vector_store %arg4[%c0_10, %c0_11], %14 {strides = array<i32>} : memref<8x128xf32, #tpu.memory_space<vmem>>, vector<8x128xf32>,
    } else {
    }
    %cst = arith.constant 0.000000e+00 : f32
    %3 = vector.broadcast %cst : f32 to vector<8x128xf32>
    %c0 = arith.constant 0 : index
    %c0_1 = arith.constant 0 : index
    %4 = vector.load %arg2[%c0, %c0_1] : memref<16x128xf32, #tpu.memory_space<vmem>>, vector<16x128xf32>
    %c0_2 = arith.constant 0 : index
    %c0_3 = arith.constant 0 : index
    %5 = vector.load %arg3[%c0_2, %c0_3] : memref<16x128xf32, #tpu.memory_space<vmem>>, vector<16x128xf32>
    %6 = arith.subf %4, %5 : vector<16x128xf32>
    %7 = arith.mulf %6, %6 : vector<16x128xf32>
    %8 = vector.shape_cast %7 : vector<16x128xf32> to vector<2x8x128xf32>
    %cst_4 = arith.constant dense<0.000000e+00> : vector<8x128xf32>
    %9 = vector.multi_reduction <add>, %8, %cst_4 [0] : vector<2x8x128xf32> to vector<8x128xf32>
    %10 = arith.addf %3, %9 : vector<8x128xf32>
    %c0_5 = arith.constant 0 : index
    %c0_6 = arith.constant 0 : index
    %11 = vector.load %arg4[%c0_5, %c0_6] : memref<8x128xf32, #tpu.memory_space<vmem>>, vector<8x128xf32>
    %12 = arith.addf %11, %10 : vector<8x128xf32>
    %c0_7 = arith.constant 0 : index
    %c0_8 = arith.constant 0 : index
    %13 = vector.load %arg4[%c0_7, %c0_8] : memref<8x128xf32, #tpu.memory_space<vmem>>, vector<8x128xf32>
    tpu.vector_store %arg4[%c0_7, %c0_8], %12 {strides = array<i32>} : memref<8x128xf32, #tpu.memory_space<vmem>>, vector<8x128xf32>,
    return
  }
  func.func @transform_0(%arg0: i32, %arg1: i32) -> (i32, i32) {
    %c1_i32 = arith.constant 1 : i32
    %0 = arith.muli %arg0, %c1_i32 : i32
    %1 = arith.addi %0, %arg1 : i32
    %c0_i32 = arith.constant 0 : i32
    %c0_i32_0 = arith.constant 0 : i32
    return %1, %c0_i32 : i32, i32
  }
  func.func @transform_1(%arg0: i32, %arg1: i32) -> (i32, i32) {
    %c1_i32 = arith.constant 1 : i32
    %0 = arith.muli %arg0, %c1_i32 : i32
    %1 = arith.addi %0, %arg1 : i32
    %c0_i32 = arith.constant 0 : i32
    %c0_i32_0 = arith.constant 0 : i32
    return %1, %c0_i32 : i32, i32
  }
  func.func @transform_2(%arg0: i32, %arg1: i32) -> (i32, i32) {
    %c0_i32 = arith.constant 0 : i32
    %c0_i32_0 = arith.constant 0 : i32
    return %arg0, %c0_i32 : i32, i32
  }
}

</mosaic_0001>

<llo_original>
// kernel: tpu_custom_call.1
$region0: #{tpu_custom_call.1}
  #allocation0 [shape = 'u32[]', space=smem, size = 0x4, offset = 0x4, fixed_abs, tag = 'smem constant byte address 0x4 - core index']
  #allocation1 [shape = 'u32[144,128]{1,0:T(1,128)}', space=vmem, size = 0x12000, scoped, tag = 'internal scratch']
  %s0 = inlined_call_operand.hbm [shape: f32[16,128], index: 0, kind: input, shape index: {}]
  %s1 = inlined_call_operand.hbm [shape: f32[16,128], index: 1, kind: input, shape index: {}]
  %s2 = inlined_call_operand.hbm [shape: f32[8,128], index: 2, kind: output, shape index: {}]
  %s3 = sld [smem:[#allocation0]]
  $region30: #{tpu_custom_call.1} parent=0
    _
  %s5 = ssub.s32 1, %s3
  %s6 = scalar_select 0, %s5, %s3
  $region1: #{tpu_custom_call.1} parent=0
    #allocation2 [shape = 'u8[8192]{0}', space=vmem, size = 0x2000, scoped, tag = 'input window, operand 0, single buffered']
    #allocation3 [shape = 's32[1]{0}', space=sflag, size = 0x4, scoped, tag = 'scoped memory for tpu_custom_call.1']
    #allocation4 [shape = 's32[1]{0}', space=sflag, size = 0x4, scoped, tag = 'scoped memory for tpu_custom_call.1']
    #allocation5 [shape = 'u8[8192]{0}', space=vmem, size = 0x2000, scoped, tag = 'input window, operand 1, single buffered']
    #allocation6 [shape = 's32[1]{0}', space=sflag, size = 0x4, scoped, tag = 'scoped memory for tpu_custom_call.1']
    #allocation7 [shape = 'u8[4096]{0}', space=vmem, size = 0x1000, scoped, tag = 'output window, operand 0, single buffered']
    %7 = vsyncpa [#allocation3], 0
    %8 = vsyncpa [#allocation6], 0
    %9 = vsyncpa [#allocation4], 0
    // Predicated region
    $region2: #{tpu_custom_call.1} parent=1 // pred_check
      _
    $region3: #{tpu_custom_call.1} parent=1 // pred_check_branch
      %11 = sbr.rel (0) target = $region5
    $region4: #{tpu_custom_call.1} parent=1 // pred_region
      %s12 = sadd.s32 0, 0
      %s13 = smul.u32 2, %s12
      %s15 = ssub.s32 256, 256
      %16 = vsyncadd [#allocation3], %s15
      %s17 = smul.addr %s13, 128
      %s18 = scalar_lea.hbm %s0, %s17
      %s19 = sshll.u32 [#allocation2], 4
      %s20 = int_to_ptr.vmem [resolvable:$true] %s19
      %25 = dma.hbm_to_vmem [thread:$0]  %s18, 256, %s20, [#allocation3], 128, 128, 8
    $region5: #{tpu_custom_call.1} parent=1 // pred_fallthru
      _
    // Predicated region
    $region6: #{tpu_custom_call.1} parent=1 // pred_check
      _
    $region7: #{tpu_custom_call.1} parent=1 // pred_check_branch
      %27 = sbr.rel (0) target = $region9
    $region8: #{tpu_custom_call.1} parent=1 // pred_region
      %s28 = sadd.s32 0, 0
      %s29 = smul.u32 2, %s28
      %s31 = ssub.s32 256, 256
      %32 = vsyncadd [#allocation6], %s31
      %s33 = smul.addr %s29, 128
      %s34 = scalar_lea.hbm %s1, %s33
      %s35 = sshll.u32 [#allocation5], 4
      %s36 = int_to_ptr.vmem [resolvable:$true] %s35
      %41 = dma.hbm_to_vmem [thread:$0]  %s34, 256, %s36, [#allocation6], 128, 128, 8
    $region9: #{tpu_custom_call.1} parent=1 // pred_fallthru
      _
    // Predicated region
    $region10: #{tpu_custom_call.1} parent=1 // pred_check
      _
    $region11: #{tpu_custom_call.1} parent=1 // pred_check_branch
      %43 = sbr.rel (0) target = $region13
    $region12: #{tpu_custom_call.1} parent=1 // pred_region
      %44 = dma.done [#allocation3], 256
    $region13: #{tpu_custom_call.1} parent=1 // pred_fallthru
      _
    // Predicated region
    $region14: #{tpu_custom_call.1} parent=1 // pred_check
      _
    $region15: #{tpu_custom_call.1} parent=1 // pred_check_branch
      %46 = sbr.rel (0) target = $region17
    $region16: #{tpu_custom_call.1} parent=1 // pred_region
      %47 = dma.done [#allocation6], 256
    $region17: #{tpu_custom_call.1} parent=1 // pred_fallthru
      _
    %s48 = sadd.s32 0, 0
    %s49 = smul.u32 2, %s48
    %s50 = sadd.s32 0, 0
    %s51 = smul.u32 2, %s50
    %p52 = scmp.eq.s32.totalorder 0, 0
    // Predicated region
    $region18: #{tpu_custom_call.1} parent=1 // pred_check
      %p53 = pneg %p52
    $region19: #{tpu_custom_call.1} parent=1 // pred_check_branch
      %55 = sbr.rel (%p53) target = $region21
    $region20: #{tpu_custom_call.1} parent=1 // pred_region
      %56 = vst [vmem:[#allocation7] sm:$0xff] 0.0
    $region21: #{tpu_custom_call.1} parent=1 // pred_fallthru
      _
    %v57 = vld [vmem:[#allocation2] sm:$0xff]
    %v58 = vld [vmem:[#allocation2 + $0x8] sm:$0xff]
    %v59 = vld [vmem:[#allocation5] sm:$0xff]
    %v60 = vld [vmem:[#allocation5 + $0x8] sm:$0xff]
    %v61 = vsub.f32 %v57, %v59
    %v62 = vsub.f32 %v58, %v60
    %v63 = vmul.f32 %v61, %v61
    %v64 = vmul.f32 %v62, %v62
    %v65 = vadd.f32 %v63, %v64
    %v66 = vadd.f32 %v65, 0.0
    %v67 = vld [vmem:[#allocation7] sm:$0xff]
    %v68 = vadd.f32 %v67, %v66
    %69 = vst [vmem:[#allocation7] sm:$0xff] %v68
    // Predicated region
    $region22: #{tpu_custom_call.1} parent=1 // pred_check
      _
    $region23: #{tpu_custom_call.1} parent=1 // pred_check_branch
      %71 = sbr.rel (0) target = $region25
    $region24: #{tpu_custom_call.1} parent=1 // pred_region
      %s73 = ssub.s32 128, 128
      %74 = vsyncadd [#allocation4], %s73
      %s76 = sshll.u32 [#allocation7], 4
      %s77 = int_to_ptr.vmem [resolvable:$true] %s76
      %79 = dma.vmem_to_hbm [thread:$0]  %s77, 128, %s2, [#allocation4]
    $region25: #{tpu_custom_call.1} parent=1 // pred_fallthru
      _
    // Predicated region
    $region26: #{tpu_custom_call.1} parent=1 // pred_check
      _
    $region27: #{tpu_custom_call.1} parent=1 // pred_check_branch
      %81 = sbr.rel (0) target = $region29
    $region28: #{tpu_custom_call.1} parent=1 // pred_region
      %82 = dma.done [#allocation4], 128
    $region29: #{tpu_custom_call.1} parent=1 // pred_fallthru
      _
    %83 = vsyncpa [#allocation3], 1
    %84 = vsyncpa [#allocation6], 1
    %85 = vsyncpa [#allocation4], 1

</llo_original>
